<compile_context>
chip_gen: v7x
topology: tpu7x:2x2x1
jax: 0.10.0
libtpu: 0.0.40
codegen_flags: <defaults>
</compile_context>

<pallas_src>
import functools

import jax
import jax.numpy as jnp
from jax import lax
from jax.experimental import pallas as pl
from jax.experimental.pallas import tpu as pltpu

ALPHA = 0.5
BETA = 0.5
LANES = 128
# 8192 rows x 128 lanes x 4 B = 4 MiB per input block; 2 inputs x 2 pipeline
# buffers = 16 MiB + elementwise temps, well inside the explicit 48 MiB
# scoped-VMEM limit below (v5e/v6e: 128 MiB physical, v7x: 64 MiB physical).
MAX_BLOCK_ROWS = 8192
VMEM_LIMIT_BYTES = 48 * 1024 * 1024


def _tversky_partial_kernel(x_ref, t_ref, o_ref, sth_ref, st_ref, stt_ref, *,
                            rows, block_rows):
    """Accumulate per-lane partial sums of tanh(x/2), t and t*tanh(x/2)."""
    p = pl.program_id(0)           # core-parallel partition
    s = pl.program_id(1)           # sequential reduction step inside partition
    steps = pl.num_programs(1)

    @pl.when(s == 0)
    def _init():
        sth_ref[...] = jnp.zeros_like(sth_ref)
        st_ref[...] = jnp.zeros_like(st_ref)
        stt_ref[...] = jnp.zeros_like(stt_ref)

    def accumulate(valid):
        xf = x_ref[...].astype(jnp.float32)
        tf = t_ref[...].astype(jnp.float32)
        # tanh runs on the EUP; the 0.5*th + 0.5 affine piece of sigmoid is
        # deferred to the wrapper epilogue (saves VPU work per element).
        th = jnp.tanh(0.5 * xf)
        if valid is not None:
            th = jnp.where(valid, th, 0.0)
            tf = jnp.where(valid, tf, 0.0)
        sth_ref[...] += jnp.sum(th, axis=0, keepdims=True)
        st_ref[...] += jnp.sum(tf, axis=0, keepdims=True)
        stt_ref[...] += jnp.sum(tf * th, axis=0, keepdims=True)

    # Global block index handled by this grid step; rem = #valid rows in it.
    blk = p * steps + s
    rem = rows - blk * block_rows

    @pl.when(rem >= block_rows)    # all blocks except (at most) the last one
    def _full():
        accumulate(None)

    @pl.when(rem < block_rows)     # partial last block / fully-clamped extra
    def _partial():
        local_row = lax.broadcasted_iota(jnp.int32, (block_rows, LANES), 0)
        accumulate(local_row < rem)

    @pl.when(s == steps - 1)
    def _write_out():
        o_ref[...] = jnp.concatenate(
            [sth_ref[...], st_ref[...], stt_ref[...]], axis=0
        ).reshape(1, 3, LANES)


def tversky_loss(inputs, targets, smooth=1.0, alpha=ALPHA, beta=BETA):
    """Pallas equivalent of TverskyLoss.forward (returns a scalar)."""
    x = jnp.reshape(inputs, (-1,))     # native dtypes; casts happen in-kernel
    t = jnp.reshape(targets, (-1,))
    n = int(x.shape[0])

    rows = n // LANES
    n_main = rows * LANES

    sum_th = jnp.float32(0.0)
    sum_t = jnp.float32(0.0)
    sum_tth = jnp.float32(0.0)

    if rows > 0:
        x2 = x[:n_main].reshape(rows, LANES)
        t2 = t[:n_main].reshape(rows, LANES)

        block_rows = min(MAX_BLOCK_ROWS, rows)   # multiple of 8 or full dim
        nblocks = pl.cdiv(rows, block_rows)
        # Two partitions so a v7x chip can run one per TensorCore; harmless
        # sequential split on single-core chips.
        # TODO(synk): query the core count from hardware info instead of
        # hard-coding 2 partitions.
        num_parts = 2 if nblocks >= 2 else 1
        steps = pl.cdiv(nblocks, num_parts)

        def in_map(p, s):
            # Clamp so the (at most one) extra grid step of an odd block count
            # DMAs an in-bounds window; its contribution is masked to zero.
            return (jnp.minimum(p * steps + s, nblocks - 1), 0)

        kernel = functools.partial(
            _tversky_partial_kernel, rows=rows, block_rows=int(block_rows))

        parts = pl.pallas_call(
            kernel,
            out_shape=jax.ShapeDtypeStruct((num_parts, 3, LANES), jnp.float32),
            grid_spec=pltpu.PrefetchScalarGridSpec(
                num_scalar_prefetch=0,
                grid=(num_parts, steps),
                in_specs=[
                    pl.BlockSpec((block_rows, LANES), in_map),
                    pl.BlockSpec((block_rows, LANES), in_map),
                ],
                out_specs=pl.BlockSpec((1, 3, LANES), lambda p, s: (p, 0, 0)),
                scratch_shapes=[
                    pltpu.VMEM((1, LANES), jnp.float32),  # sum(tanh(x/2))
                    pltpu.VMEM((1, LANES), jnp.float32),  # sum(t)
                    pltpu.VMEM((1, LANES), jnp.float32),  # sum(t*tanh(x/2))
                ],
            ),
            compiler_params=pltpu.CompilerParams(
                dimension_semantics=("parallel", "arbitrary"),
                vmem_limit_bytes=VMEM_LIMIT_BYTES,
            ),
        )(x2, t2)

        lane_sums = jnp.sum(parts, axis=(0, 2))   # (3,) over partitions, lanes
        sum_th = lane_sums[0]
        sum_t = lane_sums[1]
        sum_tth = lane_sums[2]

    # sigmoid(x) = 0.5*tanh(x/2) + 0.5  ->  reconstruct sums of p and p*t.
    sum_p = 0.5 * sum_th + 0.5 * float(n_main)
    sum_pt = 0.5 * sum_tth + 0.5 * sum_t

    # <=127-element tail handled in plain JAX (no wrapper-side pad copy).
    if n_main < n:
        xt = x[n_main:].astype(jnp.float32)
        tt = t[n_main:].astype(jnp.float32)
        pt = jax.nn.sigmoid(xt)
        sum_p = sum_p + jnp.sum(pt)
        sum_t = sum_t + jnp.sum(tt)
        sum_pt = sum_pt + jnp.sum(pt * tt)

    tp = sum_pt
    fp = sum_p - tp                      # sum((1-t)*p) == sum(p) - TP
    fn = sum_t - tp                      # sum(t*(1-p)) == sum(t) - TP
    tversky = (tp + smooth) / (tp + alpha * fp + beta * fn + smooth)
    return 1.0 - tversky


def _reference(inputs, targets, smooth=1.0, alpha=ALPHA, beta=BETA):
    p = jax.nn.sigmoid(inputs.astype(jnp.float32)).reshape(-1)
    t = targets.astype(jnp.float32).reshape(-1)
    tp = jnp.sum(p * t)
    fp = jnp.sum((1.0 - t) * p)
    fn = jnp.sum(t * (1.0 - p))
    tv = (tp + smooth) / (tp + alpha * fp + beta * fn + smooth)
    return 1.0 - tv


if __name__ == "__main__":
    key = jax.random.PRNGKey(0)
    k1, k2 = jax.random.split(key)
    # Shapes consistent with a segmentation logit map: (N, C, H, W)
    x = jax.random.normal(k1, (2, 4, 16, 16), jnp.float32)
    tgt = (jax.random.uniform(k2, (2, 4, 16, 16)) > 0.5).astype(jnp.float32)

    loss = tversky_loss(x, tgt)
    jax.block_until_ready(loss)

    ref = _reference(x, tgt)
    assert jnp.allclose(loss, ref, atol=1e-5, rtol=1e-5), (loss, ref)
    print("KERNEL_OK")
</pallas_src>

<mosaic_0001>
module attributes {stable_mosaic.version = 11 : i64} {
  func.func @_tversky_partial_kernel(%arg0: i32, %arg1: i32, %arg2: memref<16x128xf32, #tpu.memory_space<vmem>>, %arg3: memref<16x128xf32, #tpu.memory_space<vmem>>, %arg4: memref<1x3x128xf32, #tpu.memory_space<vmem>>, %arg5: memref<1x128xf32, #tpu.memory_space<vmem>>, %arg6: memref<1x128xf32, #tpu.memory_space<vmem>>, %arg7: memref<1x128xf32, #tpu.memory_space<vmem>>) attributes {dimension_semantics = [#tpu.dimension_semantics<parallel>, #tpu.dimension_semantics<arbitrary>], iteration_bounds = array<i64: 1, 1>, scalar_prefetch = 0 : i64, scratch_operands = 3 : i64, tpu.core_type = #tpu.core_type<tc>, window_params = [{transform_indices = @transform_0, window_bounds = array<i64: 16, 128>}, {transform_indices = @transform_1, window_bounds = array<i64: 16, 128>}, {transform_indices = @transform_2, window_bounds = array<i64: 1, 3, 128>}]} {
    %c0_i32 = arith.constant 0 : i32
    %0 = arith.cmpi eq, %arg1, %c0_i32 : i32
    %1 = arith.extui %0 : i1 to i32
    %c0_i32_0 = arith.constant 0 : i32
    %2 = arith.cmpi ne, %1, %c0_i32_0 : i32
    scf.if %2 {
      %cst = arith.constant 0.000000e+00 : f32
      %16 = vector.broadcast %cst : f32 to vector<1x128xf32>
      %c0 = arith.constant 0 : index
      %c0_8 = arith.constant 0 : index
      %17 = vector.load %arg5[%c0, %c0_8] : memref<1x128xf32, #tpu.memory_space<vmem>>, vector<1x128xf32>
      tpu.vector_store %arg5[%c0, %c0_8], %16 {strides = array<i32>} : memref<1x128xf32, #tpu.memory_space<vmem>>, vector<1x128xf32>,
      %cst_9 = arith.constant 0.000000e+00 : f32
      %18 = vector.broadcast %cst_9 : f32 to vector<1x128xf32>
      %c0_10 = arith.constant 0 : index
      %c0_11 = arith.constant 0 : index
      %19 = vector.load %arg6[%c0_10, %c0_11] : memref<1x128xf32, #tpu.memory_space<vmem>>, vector<1x128xf32>
      tpu.vector_store %arg6[%c0_10, %c0_11], %18 {strides = array<i32>} : memref<1x128xf32, #tpu.memory_space<vmem>>, vector<1x128xf32>,
      %cst_12 = arith.constant 0.000000e+00 : f32
      %20 = vector.broadcast %cst_12 : f32 to vector<1x128xf32>
      %c0_13 = arith.constant 0 : index
      %c0_14 = arith.constant 0 : index
      %21 = vector.load %arg7[%c0_13, %c0_14] : memref<1x128xf32, #tpu.memory_space<vmem>>, vector<1x128xf32>
      tpu.vector_store %arg7[%c0_13, %c0_14], %20 {strides = array<i32>} : memref<1x128xf32, #tpu.memory_space<vmem>>, vector<1x128xf32>,
    } else {
    }
    %c1_i32 = arith.constant 1 : i32
    %3 = arith.muli %arg0, %c1_i32 : i32
    %4 = arith.addi %3, %arg1 : i32
    %c16_i32 = arith.constant 16 : i32
    %5 = arith.muli %4, %c16_i32 : i32
    %c16_i32_1 = arith.constant 16 : i32
    %6 = arith.subi %c16_i32_1, %5 : i32
    %c16_i32_2 = arith.constant 16 : i32
    %7 = arith.cmpi sge, %6, %c16_i32_2 : i32
    %8 = arith.extui %7 : i1 to i32
    %c0_i32_3 = arith.constant 0 : i32
    %9 = arith.cmpi ne, %8, %c0_i32_3 : i32
    scf.if %9 {
      %c0 = arith.constant 0 : index
      %c0_8 = arith.constant 0 : index
      %16 = vector.load %arg2[%c0, %c0_8] : memref<16x128xf32, #tpu.memory_space<vmem>>, vector<16x128xf32>
      %c0_9 = arith.constant 0 : index
      %c0_10 = arith.constant 0 : index
      %17 = vector.load %arg3[%c0_9, %c0_10] : memref<16x128xf32, #tpu.memory_space<vmem>>, vector<16x128xf32>
      %cst = arith.constant 5.000000e-01 : f32
      %18 = vector.broadcast %cst : f32 to vector<16x128xf32>
      %19 = arith.mulf %18, %16 : vector<16x128xf32>
      %20 = math.tanh %19 : vector<16x128xf32>
      %c0_11 = arith.constant 0 : index
      %c0_12 = arith.constant 0 : index
      %21 = vector.load %arg5[%c0_11, %c0_12] : memref<1x128xf32, #tpu.memory_space<vmem>>, vector<1x128xf32>
      %cst_13 = arith.constant dense<0.000000e+00> : vector<128xf32>
      %22 = vector.multi_reduction <add>, %20, %cst_13 [0] : vector<16x128xf32> to vector<128xf32>
      %23 = vector.shape_cast %22 : vector<128xf32> to vector<1x128xf32>
      %24 = arith.addf %21, %23 : vector<1x128xf32>
      %c0_14 = arith.constant 0 : index
      %c0_15 = arith.constant 0 : index
      %25 = vector.load %arg5[%c0_14, %c0_15] : memref<1x128xf32, #tpu.memory_space<vmem>>, vector<1x128xf32>
      tpu.vector_store %arg5[%c0_14, %c0_15], %24 {strides = array<i32>} : memref<1x128xf32, #tpu.memory_space<vmem>>, vector<1x128xf32>,
      %c0_16 = arith.constant 0 : index
      %c0_17 = arith.constant 0 : index
      %26 = vector.load %arg6[%c0_16, %c0_17] : memref<1x128xf32, #tpu.memory_space<vmem>>, vector<1x128xf32>
      %cst_18 = arith.constant dense<0.000000e+00> : vector<128xf32>
      %27 = vector.multi_reduction <add>, %17, %cst_18 [0] : vector<16x128xf32> to vector<128xf32>
      %28 = vector.shape_cast %27 : vector<128xf32> to vector<1x128xf32>
      %29 = arith.addf %26, %28 : vector<1x128xf32>
      %c0_19 = arith.constant 0 : index
      %c0_20 = arith.constant 0 : index
      %30 = vector.load %arg6[%c0_19, %c0_20] : memref<1x128xf32, #tpu.memory_space<vmem>>, vector<1x128xf32>
      tpu.vector_store %arg6[%c0_19, %c0_20], %29 {strides = array<i32>} : memref<1x128xf32, #tpu.memory_space<vmem>>, vector<1x128xf32>,
      %c0_21 = arith.constant 0 : index
      %c0_22 = arith.constant 0 : index
      %31 = vector.load %arg7[%c0_21, %c0_22] : memref<1x128xf32, #tpu.memory_space<vmem>>, vector<1x128xf32>
      %32 = arith.mulf %17, %20 : vector<16x128xf32>
      %cst_23 = arith.constant dense<0.000000e+00> : vector<128xf32>
      %33 = vector.multi_reduction <add>, %32, %cst_23 [0] : vector<16x128xf32> to vector<128xf32>
      %34 = vector.shape_cast %33 : vector<128xf32> to vector<1x128xf32>
      %35 = arith.addf %31, %34 : vector<1x128xf32>
      %c0_24 = arith.constant 0 : index
      %c0_25 = arith.constant 0 : index
      %36 = vector.load %arg7[%c0_24, %c0_25] : memref<1x128xf32, #tpu.memory_space<vmem>>, vector<1x128xf32>
      tpu.vector_store %arg7[%c0_24, %c0_25], %35 {strides = array<i32>} : memref<1x128xf32, #tpu.memory_space<vmem>>, vector<1x128xf32>,
    } else {
    }
    %c16_i32_4 = arith.constant 16 : i32
    %10 = arith.cmpi slt, %6, %c16_i32_4 : i32
    %11 = arith.extui %10 : i1 to i32
    %c0_i32_5 = arith.constant 0 : i32
    %12 = arith.cmpi ne, %11, %c0_i32_5 : i32
    scf.if %12 {
      %16 = tpu.iota {dimensions = array<i32: 0>} : vector<16x128xi32>
      %17 = vector.broadcast %6 : i32 to vector<16x128xi32>
      %18 = arith.cmpi slt, %16, %17 : vector<16x128xi32>
      %c0 = arith.constant 0 : index
      %c0_8 = arith.constant 0 : index
      %19 = vector.load %arg2[%c0, %c0_8] : memref<16x128xf32, #tpu.memory_space<vmem>>, vector<16x128xf32>
      %c0_9 = arith.constant 0 : index
      %c0_10 = arith.constant 0 : index
      %20 = vector.load %arg3[%c0_9, %c0_10] : memref<16x128xf32, #tpu.memory_space<vmem>>, vector<16x128xf32>
      %cst = arith.constant 5.000000e-01 : f32
      %21 = vector.broadcast %cst : f32 to vector<16x128xf32>
      %22 = arith.mulf %21, %19 : vector<16x128xf32>
      %23 = math.tanh %22 : vector<16x128xf32>
      %cst_11 = arith.constant 0.000000e+00 : f32
      %24 = vector.broadcast %cst_11 : f32 to vector<16x128xf32>
      %25 = arith.select %18, %23, %24 : vector<16x128xi1>, vector<16x128xf32>
      %cst_12 = arith.constant 0.000000e+00 : f32
      %26 = vector.broadcast %cst_12 : f32 to vector<16x128xf32>
      %27 = arith.select %18, %20, %26 : vector<16x128xi1>, vector<16x128xf32>
      %c0_13 = arith.constant 0 : index
      %c0_14 = arith.constant 0 : index
      %28 = vector.load %arg5[%c0_13, %c0_14] : memref<1x128xf32, #tpu.memory_space<vmem>>, vector<1x128xf32>
      %cst_15 = arith.constant dense<0.000000e+00> : vector<128xf32>
      %29 = vector.multi_reduction <add>, %25, %cst_15 [0] : vector<16x128xf32> to vector<128xf32>
      %30 = vector.shape_cast %29 : vector<128xf32> to vector<1x128xf32>
      %31 = arith.addf %28, %30 : vector<1x128xf32>
      %c0_16 = arith.constant 0 : index
      %c0_17 = arith.constant 0 : index
      %32 = vector.load %arg5[%c0_16, %c0_17] : memref<1x128xf32, #tpu.memory_space<vmem>>, vector<1x128xf32>
      tpu.vector_store %arg5[%c0_16, %c0_17], %31 {strides = array<i32>} : memref<1x128xf32, #tpu.memory_space<vmem>>, vector<1x128xf32>,
      %c0_18 = arith.constant 0 : index
      %c0_19 = arith.constant 0 : index
      %33 = vector.load %arg6[%c0_18, %c0_19] : memref<1x128xf32, #tpu.memory_space<vmem>>, vector<1x128xf32>
      %cst_20 = arith.constant dense<0.000000e+00> : vector<128xf32>
      %34 = vector.multi_reduction <add>, %27, %cst_20 [0] : vector<16x128xf32> to vector<128xf32>
      %35 = vector.shape_cast %34 : vector<128xf32> to vector<1x128xf32>
      %36 = arith.addf %33, %35 : vector<1x128xf32>
      %c0_21 = arith.constant 0 : index
      %c0_22 = arith.constant 0 : index
      %37 = vector.load %arg6[%c0_21, %c0_22] : memref<1x128xf32, #tpu.memory_space<vmem>>, vector<1x128xf32>
      tpu.vector_store %arg6[%c0_21, %c0_22], %36 {strides = array<i32>} : memref<1x128xf32, #tpu.memory_space<vmem>>, vector<1x128xf32>,
      %c0_23 = arith.constant 0 : index
      %c0_24 = arith.constant 0 : index
      %38 = vector.load %arg7[%c0_23, %c0_24] : memref<1x128xf32, #tpu.memory_space<vmem>>, vector<1x128xf32>
      %39 = arith.mulf %27, %25 : vector<16x128xf32>
      %cst_25 = arith.constant dense<0.000000e+00> : vector<128xf32>
      %40 = vector.multi_reduction <add>, %39, %cst_25 [0] : vector<16x128xf32> to vector<128xf32>
      %41 = vector.shape_cast %40 : vector<128xf32> to vector<1x128xf32>
      %42 = arith.addf %38, %41 : vector<1x128xf32>
      %c0_26 = arith.constant 0 : index
      %c0_27 = arith.constant 0 : index
      %43 = vector.load %arg7[%c0_26, %c0_27] : memref<1x128xf32, #tpu.memory_space<vmem>>, vector<1x128xf32>
      tpu.vector_store %arg7[%c0_26, %c0_27], %42 {strides = array<i32>} : memref<1x128xf32, #tpu.memory_space<vmem>>, vector<1x128xf32>,
    } else {
    }
    %c0_i32_6 = arith.constant 0 : i32
    %13 = arith.cmpi eq, %arg1, %c0_i32_6 : i32
    %14 = arith.extui %13 : i1 to i32
    %c0_i32_7 = arith.constant 0 : i32
    %15 = arith.cmpi ne, %14, %c0_i32_7 : i32
    scf.if %15 {
      %c0 = arith.constant 0 : index
      %c0_8 = arith.constant 0 : index
      %16 = vector.load %arg5[%c0, %c0_8] : memref<1x128xf32, #tpu.memory_space<vmem>>, vector<1x128xf32>
      %c0_9 = arith.constant 0 : index
      %c0_10 = arith.constant 0 : index
      %17 = vector.load %arg6[%c0_9, %c0_10] : memref<1x128xf32, #tpu.memory_space<vmem>>, vector<1x128xf32>
      %c0_11 = arith.constant 0 : index
      %c0_12 = arith.constant 0 : index
      %18 = vector.load %arg7[%c0_11, %c0_12] : memref<1x128xf32, #tpu.memory_space<vmem>>, vector<1x128xf32>
      %19 = tpu.concatenate %16, %17, %18 in 0 : vector<1x128xf32>, vector<1x128xf32>, vector<1x128xf32> -> vector<3x128xf32>
      %20 = vector.shape_cast %19 : vector<3x128xf32> to vector<1x3x128xf32>
      %c0_13 = arith.constant 0 : index
      %c0_14 = arith.constant 0 : index
      %c0_15 = arith.constant 0 : index
      %21 = vector.load %arg4[%c0_13, %c0_14, %c0_15] : memref<1x3x128xf32, #tpu.memory_space<vmem>>, vector<1x3x128xf32>
      tpu.vector_store %arg4[%c0_13, %c0_14, %c0_15], %20 {strides = array<i32>} : memref<1x3x128xf32, #tpu.memory_space<vmem>>, vector<1x3x128xf32>,
    } else {
    }
    return
  }
  func.func @transform_0(%arg0: i32, %arg1: i32) -> (i32, i32) {
    %c1_i32 = arith.constant 1 : i32
    %0 = arith.muli %arg0, %c1_i32 : i32
    %1 = arith.addi %0, %arg1 : i32
    %c0_i32 = arith.constant 0 : i32
    %2 = arith.minsi %1, %c0_i32 : i32
    %c0_i32_0 = arith.constant 0 : i32
    %c0_i32_1 = arith.constant 0 : i32
    return %2, %c0_i32_0 : i32, i32
  }
  func.func @transform_1(%arg0: i32, %arg1: i32) -> (i32, i32) {
    %c1_i32 = arith.constant 1 : i32
    %0 = arith.muli %arg0, %c1_i32 : i32
    %1 = arith.addi %0, %arg1 : i32
    %c0_i32 = arith.constant 0 : i32
    %2 = arith.minsi %1, %c0_i32 : i32
    %c0_i32_0 = arith.constant 0 : i32
    %c0_i32_1 = arith.constant 0 : i32
    return %2, %c0_i32_0 : i32, i32
  }
  func.func @transform_2(%arg0: i32, %arg1: i32) -> (i32, i32, i32) {
    %c0_i32 = arith.constant 0 : i32
    %c0_i32_0 = arith.constant 0 : i32
    %c0_i32_1 = arith.constant 0 : i32
    return %arg0, %c0_i32, %c0_i32_0 : i32, i32, i32
  }
}

</mosaic_0001>

<llo_original>
// kernel: tpu_custom_call.1
$region0: #{tpu_custom_call.1}
  #allocation0 [shape = 'u32[]', space=smem, size = 0x4, offset = 0x4, fixed_abs, tag = 'smem constant byte address 0x4 - core index']
  #allocation1 [shape = 'u32[144,128]{1,0:T(1,128)}', space=vmem, size = 0x12000, scoped, tag = 'internal scratch']
  #allocation2 [shape = 'f32[1,128]{1,0:T(1,128)}', space=vmem, size = 0x200, scoped, tag = 'scratch operand']
  #allocation3 [shape = 'f32[1,128]{1,0:T(1,128)}', space=vmem, size = 0x200, scoped, tag = 'scratch operand']
  #allocation4 [shape = 'f32[1,128]{1,0:T(1,128)}', space=vmem, size = 0x200, scoped, tag = 'scratch operand']
  %s0 = inlined_call_operand.hbm [shape: f32[16,128], index: 0, kind: input, shape index: {}]
  %s1 = inlined_call_operand.hbm [shape: f32[16,128], index: 1, kind: input, shape index: {}]
  %s2 = inlined_call_operand.vmem [shape: f32[1,3,128], index: 2, kind: output, shape index: {}]
  %s3 = sld [smem:[#allocation0]]
  $region42: #{tpu_custom_call.1} parent=0
    _
  %s5 = ssub.s32 1, %s3
  %s6 = scalar_select 0, %s5, %s3
  $region1: #{tpu_custom_call.1} parent=0
    #allocation5 [shape = 'u8[8192]{0}', space=vmem, size = 0x2000, scoped, tag = 'input window, operand 0, single buffered']
    #allocation6 [shape = 's32[1]{0}', space=sflag, size = 0x4, scoped, tag = 'scoped memory for tpu_custom_call.1']
    #allocation7 [shape = 'u8[8192]{0}', space=vmem, size = 0x2000, scoped, tag = 'input window, operand 1, single buffered']
    #allocation8 [shape = 's32[1]{0}', space=sflag, size = 0x4, scoped, tag = 'scoped memory for tpu_custom_call.1']
    %7 = vsyncpa [#allocation6], 0
    %8 = vsyncpa [#allocation8], 0
    // Predicated region
    $region2: #{tpu_custom_call.1} parent=1 // pred_check
      _
    $region3: #{tpu_custom_call.1} parent=1 // pred_check_branch
      %10 = sbr.rel (0) target = $region5
    $region4: #{tpu_custom_call.1} parent=1 // pred_region
      %s11 = sadd.s32 0, 0
      %p12 = scmp.lt.s32.totalorder %s11, 0
      %s13 = scalar_select %p12, %s11, 0
      %s14 = smul.u32 2, %s13
      %s16 = ssub.s32 256, 256
      %17 = vsyncadd [#allocation6], %s16
      %s18 = smul.addr %s14, 128
      %s19 = scalar_lea.hbm %s0, %s18
      %s20 = sshll.u32 [#allocation5], 4
      %s21 = int_to_ptr.vmem [resolvable:$true] %s20
      %26 = dma.hbm_to_vmem [thread:$0]  %s19, 256, %s21, [#allocation6], 128, 128, 8
    $region5: #{tpu_custom_call.1} parent=1 // pred_fallthru
      _
    // Predicated region
    $region6: #{tpu_custom_call.1} parent=1 // pred_check
      _
    $region7: #{tpu_custom_call.1} parent=1 // pred_check_branch
      %28 = sbr.rel (0) target = $region9
    $region8: #{tpu_custom_call.1} parent=1 // pred_region
      %s29 = sadd.s32 0, 0
      %p30 = scmp.lt.s32.totalorder %s29, 0
      %s31 = scalar_select %p30, %s29, 0
      %s32 = smul.u32 2, %s31
      %s34 = ssub.s32 256, 256
      %35 = vsyncadd [#allocation8], %s34
      %s36 = smul.addr %s32, 128
      %s37 = scalar_lea.hbm %s1, %s36
      %s38 = sshll.u32 [#allocation7], 4
      %s39 = int_to_ptr.vmem [resolvable:$true] %s38
      %44 = dma.hbm_to_vmem [thread:$0]  %s37, 256, %s39, [#allocation8], 128, 128, 8
    $region9: #{tpu_custom_call.1} parent=1 // pred_fallthru
      _
    // Predicated region
    $region10: #{tpu_custom_call.1} parent=1 // pred_check
      _
    $region11: #{tpu_custom_call.1} parent=1 // pred_check_branch
      %46 = sbr.rel (0) target = $region13
    $region12: #{tpu_custom_call.1} parent=1 // pred_region
      %47 = dma.done [#allocation6], 256
    $region13: #{tpu_custom_call.1} parent=1 // pred_fallthru
      _
    // Predicated region
    $region14: #{tpu_custom_call.1} parent=1 // pred_check
      _
    $region15: #{tpu_custom_call.1} parent=1 // pred_check_branch
      %49 = sbr.rel (0) target = $region17
    $region16: #{tpu_custom_call.1} parent=1 // pred_region
      %50 = dma.done [#allocation8], 256
    $region17: #{tpu_custom_call.1} parent=1 // pred_fallthru
      _
    %s51 = sadd.s32 0, 0
    %p52 = scmp.lt.s32.totalorder %s51, 0
    %s53 = scalar_select %p52, %s51, 0
    %s54 = smul.u32 2, %s53
    %s55 = sadd.s32 0, 0
    %p56 = scmp.lt.s32.totalorder %s55, 0
    %s57 = scalar_select %p56, %s55, 0
    %s58 = smul.u32 2, %s57
    %p59 = scmp.eq.s32.totalorder 0, 0
    // Predicated region
    $region18: #{tpu_custom_call.1} parent=1 // pred_check
      %p60 = pneg %p59
    $region19: #{tpu_custom_call.1} parent=1 // pred_check_branch
      %62 = sbr.rel (%p60) target = $region21
    $region20: #{tpu_custom_call.1} parent=1 // pred_region
      %63 = vst [vmem:[#allocation2] sm:$0x1] 0.0
      %64 = vst [vmem:[#allocation3] sm:$0x1] 0.0
      %65 = vst [vmem:[#allocation4] sm:$0x1] 0.0
    $region21: #{tpu_custom_call.1} parent=1 // pred_fallthru
      _
    %s66 = sadd.s32 0, 0
    %s67 = smul.u32 %s66, 16
    %s68 = ssub.s32 16, %s67
    %p69 = scmp.ge.s32.totalorder %s68, 16
    // Predicated region
    $region22: #{tpu_custom_call.1} parent=1 // pred_check
      %p70 = pneg %p69
    $region23: #{tpu_custom_call.1} parent=1 // pred_check_branch
      %72 = sbr.rel (%p70) target = $region25
    $region24: #{tpu_custom_call.1} parent=1 // pred_region
      %v73 = vld [vmem:[#allocation5] sm:$0xff]
      %v74 = vld [vmem:[#allocation5 + $0x8] sm:$0xff]
      %v75 = vld [vmem:[#allocation7] sm:$0xff]
      %v76 = vld [vmem:[#allocation7 + $0x8] sm:$0xff]
      %v77 = vmul.f32 %v73, 0.5
      %v78 = vmul.f32 %v74, 0.5
      %v79 = vtanh.pop %v77
      %v80 = vtanh.pop %v78
      %v81 = vld [vmem:[#allocation2] sm:$0x1]
      %v82 = vadd.f32 %v79, %v80
      %v83 = vrot.slane %v82, 4
      %v84 = vadd.f32 %v82, %v83
      %v85 = vrot.slane %v84, 2
      %v86 = vadd.f32 %v84, %v85
      %v87 = vrot.slane %v86, 1
      %v88 = vadd.f32 %v86, %v87
      %v89 = vadd.f32 %v81, %v88
      %90 = vst [vmem:[#allocation2] sm:$0x1] %v89
      %v91 = vld [vmem:[#allocation3] sm:$0x1]
      %v92 = vadd.f32 %v75, %v76
      %v93 = vrot.slane %v92, 4
      %v94 = vadd.f32 %v92, %v93
      %v95 = vrot.slane %v94, 2
      %v96 = vadd.f32 %v94, %v95
      %v97 = vrot.slane %v96, 1
      %v98 = vadd.f32 %v96, %v97
      %v99 = vadd.f32 %v91, %v98
      %100 = vst [vmem:[#allocation3] sm:$0x1] %v99
      %v101 = vld [vmem:[#allocation4] sm:$0x1]
      %v102 = vmul.f32 %v75, %v79
      %v103 = vmul.f32 %v76, %v80
      %v104 = vadd.f32 %v102, %v103
      %v105 = vrot.slane %v104, 4
      %v106 = vadd.f32 %v104, %v105
      %v107 = vrot.slane %v106, 2
      %v108 = vadd.f32 %v106, %v107
      %v109 = vrot.slane %v108, 1
      %v110 = vadd.f32 %v108, %v109
      %v111 = vadd.f32 %v101, %v110
      %112 = vst [vmem:[#allocation4] sm:$0x1] %v111
    $region25: #{tpu_custom_call.1} parent=1 // pred_fallthru
      _
    %p113 = scmp.lt.s32.totalorder %s68, 16
    // Predicated region
    $region26: #{tpu_custom_call.1} parent=1 // pred_check
      %p114 = pneg %p113
    $region27: #{tpu_custom_call.1} parent=1 // pred_check_branch
      %116 = sbr.rel (%p114) target = $region29
    $region28: #{tpu_custom_call.1} parent=1 // pred_region
      %v117 = vlaneseq
      %v118 = vshrl.u32 %v117, 7
      %v119 = vadd.s32 %v118, 8
      %v120 = vstv %s68
      %vm121 = vcmp.lt.s32.totalorder %v118, %v120
      %vm122 = vcmp.lt.s32.totalorder %v119, %v120
      %v123 = vld [vmem:[#allocation5] sm:$0xff]
      %v124 = vld [vmem:[#allocation5 + $0x8] sm:$0xff]
      %v125 = vld [vmem:[#allocation7] sm:$0xff]
      %v126 = vld [vmem:[#allocation7 + $0x8] sm:$0xff]
      %v127 = vmul.f32 %v123, 0.5
      %v128 = vmul.f32 %v124, 0.5
      %v129 = vtanh.pop %v127
      %v130 = vtanh.pop %v128
      %v131 = vsel %vm121, %v129, 0.0
      %v132 = vsel %vm122, %v130, 0.0
      %v133 = vsel %vm121, %v125, 0.0
      %v134 = vsel %vm122, %v126, 0.0
      %v135 = vld [vmem:[#allocation2] sm:$0x1]
      %v136 = vadd.f32 %v131, %v132
      %v137 = vrot.slane %v136, 4
      %v138 = vadd.f32 %v136, %v137
      %v139 = vrot.slane %v138, 2
      %v140 = vadd.f32 %v138, %v139
      %v141 = vrot.slane %v140, 1
      %v142 = vadd.f32 %v140, %v141
      %v143 = vadd.f32 %v135, %v142
      %144 = vst [vmem:[#allocation2] sm:$0x1] %v143
      %v145 = vld [vmem:[#allocation3] sm:$0x1]
      %v146 = vadd.f32 %v133, %v134
      %v147 = vrot.slane %v146, 4
      %v148 = vadd.f32 %v146, %v147
      %v149 = vrot.slane %v148, 2
      %v150 = vadd.f32 %v148, %v149
      %v151 = vrot.slane %v150, 1
      %v152 = vadd.f32 %v150, %v151
      %v153 = vadd.f32 %v145, %v152
      %154 = vst [vmem:[#allocation3] sm:$0x1] %v153
      %v155 = vld [vmem:[#allocation4] sm:$0x1]
      %v156 = vmul.f32 %v133, %v131
      %v157 = vmul.f32 %v134, %v132
      %v158 = vadd.f32 %v156, %v157
      %v159 = vrot.slane %v158, 4
      %v160 = vadd.f32 %v158, %v159
      %v161 = vrot.slane %v160, 2
      %v162 = vadd.f32 %v160, %v161
      %v163 = vrot.slane %v162, 1
      %v164 = vadd.f32 %v162, %v163
      %v165 = vadd.f32 %v155, %v164
      %166 = vst [vmem:[#allocation4] sm:$0x1] %v165
    $region29: #{tpu_custom_call.1} parent=1 // pred_fallthru
      _
    // Predicated region
    $region30: #{tpu_custom_call.1} parent=1 // pred_check
      %p167 = pneg %p59
    $region31: #{tpu_custom_call.1} parent=1 // pred_check_branch
      %169 = sbr.rel (%p167) target = $region33
    $region32: #{tpu_custom_call.1} parent=1 // pred_region
      %v170 = vld [vmem:[#allocation2] sm:$0x1]
      %v171 = vld [vmem:[#allocation3] sm:$0x1]
      %v172 = vld [vmem:[#allocation4] sm:$0x1]
      %v174 = vlaneseq
      %v175 = vshrl.u32 %v174, 7
      %v176 = vsub.s32 0, %v175
      %v177 = vrot.slane %v171, %v176
      %v180 = vlaneseq
      %v181 = vshrl.u32 %v180, 7
      %v182 = vsub.s32 0, %v181
      %v183 = vrot.slane %v172, %v182
      %vm185 = vcmask 1040384
      %v186 = vsel %vm185, %v170, %v177
      %vm187 = vcmask 1041408
      %v188 = vsel %vm187, %v186, %v183
      %189 = vst [vmem:[%s2] sm:$0x7] %v188
    $region33: #{tpu_custom_call.1} parent=1 // pred_fallthru
      _
    // Predicated region
    $region34: #{tpu_custom_call.1} parent=1 // pred_check
      _
    $region35: #{tpu_custom_call.1} parent=1 // pred_check_branch
      %191 = sbr.rel (0) target = $region37
    $region36: #{tpu_custom_call.1} parent=1 // pred_region
      _
    $region37: #{tpu_custom_call.1} parent=1 // pred_fallthru
      _
    // Predicated region
    $region38: #{tpu_custom_call.1} parent=1 // pred_check
      _
    $region39: #{tpu_custom_call.1} parent=1 // pred_check_branch
      %193 = sbr.rel (0) target = $region41
    $region40: #{tpu_custom_call.1} parent=1 // pred_region
      _
    $region41: #{tpu_custom_call.1} parent=1 // pred_fallthru
      _
    %194 = vsyncpa [#allocation6], 1
    %195 = vsyncpa [#allocation8], 1

</llo_original>
